<compile_context>
chip_gen: v5e
topology: v5e:2x2
jax: 0.10.0
libtpu: 0.0.40
codegen_flags: <defaults>
</compile_context>

<pallas_src>
import functools

import jax
import jax.numpy as jnp
from jax.experimental import pallas as pl
from jax.experimental.pallas import tpu as pltpu


def _round_up(a, m):
    return ((a + m - 1) // m) * m


# ---------------------------------------------------------------------------
# Kernel (transposed layout: batch on the lane axis)
# ---------------------------------------------------------------------------
def _mlp_kernel(x_ref, p_ref, o_ref, *, hid, in_pad):
    # Packed-slab layout (all region starts are multiples of 8 sublanes):
    #   [0      : hid    , :      ]  W2  (hid, hid)        fc2.weight
    #   [hid    : 2*hid  , 0:in_pad] W1  (hid, in_pad)     fc1.weight (zero-padded cols)
    #   [2*hid  : 3*hid  , 0:1    ]  b1  (hid, 1)          fc1.bias as a column
    #   [3*hid  : 4*hid  , 0:1    ]  b2  (hid, 1)          fc2.bias as a column
    #   [4*hid  : 4*hid+1, :      ]  W3  (1, hid)          out.weight
    #   [4*hid+8: 4*hid+9, 0:1    ]  b3  (1, 1)            out.bias
    w2 = p_ref[0:hid, :]
    w1 = p_ref[hid:2 * hid, 0:in_pad]
    b1 = p_ref[2 * hid:3 * hid, 0:1]
    b2 = p_ref[3 * hid:4 * hid, 0:1]
    w3 = p_ref[4 * hid:4 * hid + 1, :]
    b3 = p_ref[4 * hid + 8:4 * hid + 9, 0:1]

    x = x_ref[...]                                    # (in_pad, tile_b), lane-dense

    # Layer 1 + ReLU : (hid, tile_b)
    h1 = jnp.maximum(jnp.dot(w1, x, preferred_element_type=jnp.float32) + b1, 0.0)
    # Layer 2 + ReLU : (hid, tile_b)
    h2 = jnp.maximum(jnp.dot(w2, h1, preferred_element_type=jnp.float32) + b2, 0.0)
    # Output layer   : (1, tile_b)  -- N = tile_b keeps the MXU fully lane-dense
    logits = jnp.dot(w3, h2, preferred_element_type=jnp.float32) + b3

    # Sigmoid: exp on EUP, approximate reciprocal on EUP + one Newton step for full
    # f32 accuracy.  Clamp the exp argument so d stays finite (Newton on inf -> NaN);
    # sigmoid at logits < -80 is ~0 to well below the 1e-5 tolerance anyway.
    z = jnp.minimum(-logits, 80.0)
    d = 1.0 + jnp.exp(z)
    r = pl.reciprocal(d, approx=True)
    o_ref[...] = r * (2.0 - d * r)                    # lane-dense (1, tile_b) store


# ---------------------------------------------------------------------------
# Wrapper
# ---------------------------------------------------------------------------
def agent_model_forward(x, packed_params):
    """x: (B, input_size) f32.  packed_params: (4*hidden + 16, hidden) f32 slab."""
    B, in_size = x.shape
    hid = packed_params.shape[1]
    assert packed_params.shape[0] == 4 * hid + 16, "bad packed param slab"
    in_pad = _round_up(in_size, 8)
    out_size = 1  # packed layout hard-codes AgentModel's output_size == 1

    # Batch tiling: lane axis must be a multiple of 128 or the full dim.
    if B <= 128:
        tile_b = B
        b_pad = B
    else:
        # >= 2 grid steps so both v7x TensorCores get work; cap amortizes step overhead.
        tile_b = min(2048, _round_up(pl.cdiv(B, 2), 128))
        b_pad = _round_up(B, tile_b)
    grid = (b_pad // tile_b,)

    # Layout plumbing (wrapper side): batch onto lanes, features zero-padded to 8.
    x_t = jnp.zeros((in_pad, b_pad), jnp.float32).at[:in_size, :B].set(x.T)

    kernel = functools.partial(_mlp_kernel, hid=hid, in_pad=in_pad)

    flops = 2 * B * (in_size * hid + hid * hid + hid)
    bytes_accessed = 4 * (x.size + packed_params.size + B * out_size)

    out_t = pl.pallas_call(
        kernel,
        out_shape=jax.ShapeDtypeStruct((1, b_pad), jnp.float32),
        grid=grid,
        in_specs=[
            pl.BlockSpec((in_pad, tile_b), lambda i: (0, i)),      # x^T tiled over batch
            pl.BlockSpec(packed_params.shape, lambda i: (0, 0)),   # weight slab resident
        ],
        out_specs=pl.BlockSpec((1, tile_b), lambda i: (0, i)),     # lane-dense output
        compiler_params=pltpu.CompilerParams(
            dimension_semantics=("parallel",)),
        cost_estimate=pl.CostEstimate(
            flops=flops, transcendentals=B, bytes_accessed=bytes_accessed),
    )(x_t, packed_params)

    return out_t[0, :B].reshape(B, out_size)


# ---------------------------------------------------------------------------
# Parameters (PyTorch nn.Linear convention: weight is (out_features, in_features))
# ---------------------------------------------------------------------------
def init_params(key, input_size=6, hidden_size=32, output_size=1):
    k1, k2, k3, k4, k5, k6 = jax.random.split(key, 6)
    s1 = 1.0 / jnp.sqrt(input_size)
    s2 = 1.0 / jnp.sqrt(hidden_size)
    return {
        "fc1_w": jax.random.uniform(k1, (hidden_size, input_size), jnp.float32, -s1, s1),
        "fc1_b": jax.random.uniform(k2, (hidden_size,), jnp.float32, -s1, s1),
        "fc2_w": jax.random.uniform(k3, (hidden_size, hidden_size), jnp.float32, -s2, s2),
        "fc2_b": jax.random.uniform(k4, (hidden_size,), jnp.float32, -s2, s2),
        "out_w": jax.random.uniform(k5, (output_size, hidden_size), jnp.float32, -s2, s2),
        "out_b": jax.random.uniform(k6, (output_size,), jnp.float32, -s2, s2),
    }


def pack_params(p):
    """Pack all parameters into one sublane-aligned (4*hid + 16, hid) f32 slab."""
    hid, in_size = p["fc1_w"].shape
    assert p["out_w"].shape[0] == 1, "packed layout assumes output_size == 1"
    assert hid % 8 == 0, "hidden_size must be a multiple of 8 for the aligned slab"
    slab = jnp.zeros((4 * hid + 16, hid), jnp.float32)
    slab = slab.at[0:hid, :].set(p["fc2_w"])                       # W2
    slab = slab.at[hid:2 * hid, 0:in_size].set(p["fc1_w"])         # W1 (cols zero-padded)
    slab = slab.at[2 * hid:3 * hid, 0].set(p["fc1_b"])             # b1 column
    slab = slab.at[3 * hid:4 * hid, 0].set(p["fc2_b"])             # b2 column
    slab = slab.at[4 * hid, :].set(p["out_w"][0])                  # W3 row
    slab = slab.at[4 * hid + 8, 0].set(p["out_b"][0])              # b3 scalar
    return slab


def _reference_forward(x, p):
    """Pure-JAX reference of the PyTorch forward pass."""
    h1 = jnp.maximum(x @ p["fc1_w"].T + p["fc1_b"], 0.0)
    h2 = jnp.maximum(h1 @ p["fc2_w"].T + p["fc2_b"], 0.0)
    return jax.nn.sigmoid(h2 @ p["out_w"].T + p["out_b"])


if __name__ == "__main__":
    key = jax.random.PRNGKey(0)
    kx, kp = jax.random.split(key)

    batch, input_size, hidden_size, output_size = 8, 6, 32, 1
    x = jax.random.normal(kx, (batch, input_size), dtype=jnp.float32)
    params = init_params(kp, input_size, hidden_size, output_size)
    packed = pack_params(params)

    out = agent_model_forward(x, packed)
    out = jax.block_until_ready(out)

    ref = _reference_forward(x, params)
    assert out.shape == (batch, output_size)
    assert jnp.allclose(out, ref, atol=1e-5, rtol=1e-5), "mismatch vs reference"

    print("KERNEL_OK")
</pallas_src>

<mosaic_0001>
module attributes {stable_mosaic.version = 11 : i64} {
  func.func @_mlp_kernel(%arg0: i32, %arg1: memref<8x8xf32, #tpu.memory_space<vmem>>, %arg2: memref<144x32xf32, #tpu.memory_space<vmem>>, %arg3: memref<1x8xf32, #tpu.memory_space<vmem>>) attributes {dimension_semantics = [#tpu.dimension_semantics<parallel>], iteration_bounds = array<i64: 1>, scalar_prefetch = 0 : i64, scratch_operands = 0 : i64, tpu.core_type = #tpu.core_type<tc>, window_params = [{transform_indices = @transform_0, window_bounds = array<i64: 8, 8>}, {pipeline_mode = #tpu.pipeline_mode<synchronous>, transform_indices = @transform_1, window_bounds = array<i64: 144, 32>}, {transform_indices = @transform_2, window_bounds = array<i64: 1, 8>}]} {
    %c0 = arith.constant 0 : index
    %c0_0 = arith.constant 0 : index
    %0 = vector.load %arg2[%c0, %c0_0] : memref<144x32xf32, #tpu.memory_space<vmem>>, vector<32x32xf32>
    %c32 = arith.constant 32 : index
    %c0_1 = arith.constant 0 : index
    %1 = vector.load %arg2[%c32, %c0_1] : memref<144x32xf32, #tpu.memory_space<vmem>>, vector<32x8xf32>
    %c64 = arith.constant 64 : index
    %c0_2 = arith.constant 0 : index
    %2 = vector.load %arg2[%c64, %c0_2] : memref<144x32xf32, #tpu.memory_space<vmem>>, vector<32x1xf32>
    %c96 = arith.constant 96 : index
    %c0_3 = arith.constant 0 : index
    %3 = vector.load %arg2[%c96, %c0_3] : memref<144x32xf32, #tpu.memory_space<vmem>>, vector<32x1xf32>
    %c128 = arith.constant 128 : index
    %c0_4 = arith.constant 0 : index
    %4 = vector.load %arg2[%c128, %c0_4] : memref<144x32xf32, #tpu.memory_space<vmem>>, vector<1x32xf32>
    %c136 = arith.constant 136 : index
    %c0_5 = arith.constant 0 : index
    %5 = vector.load %arg2[%c136, %c0_5] : memref<144x32xf32, #tpu.memory_space<vmem>>, vector<1x1xf32>
    %c0_6 = arith.constant 0 : index
    %c0_7 = arith.constant 0 : index
    %6 = vector.load %arg1[%c0_6, %c0_7] : memref<8x8xf32, #tpu.memory_space<vmem>>, vector<8x8xf32>
    %cst = arith.constant dense<0.000000e+00> : vector<32x8xf32>
    %7 = tpu.matmul %1, %6, %cst {dimension_numbers = #tpu.dot_dimension_numbers<[1], [0], [0], [1], [0, 0, 1, 1], [], []>} : vector<32x8xf32>, vector<8x8xf32>, vector<32x8xf32> -> vector<32x8xf32>
    %8 = vector.broadcast %2 : vector<32x1xf32> to vector<32x8xf32>
    %9 = arith.addf %7, %8 : vector<32x8xf32>
    %cst_8 = arith.constant 0.000000e+00 : f32
    %10 = vector.broadcast %cst_8 : f32 to vector<32x8xf32>
    %11 = arith.maximumf %9, %10 : vector<32x8xf32>
    %cst_9 = arith.constant dense<0.000000e+00> : vector<32x8xf32>
    %12 = tpu.matmul %0, %11, %cst_9 {dimension_numbers = #tpu.dot_dimension_numbers<[1], [0], [0], [1], [0, 0, 1, 1], [], []>} : vector<32x32xf32>, vector<32x8xf32>, vector<32x8xf32> -> vector<32x8xf32>
    %13 = vector.broadcast %3 : vector<32x1xf32> to vector<32x8xf32>
    %14 = arith.addf %12, %13 : vector<32x8xf32>
    %cst_10 = arith.constant 0.000000e+00 : f32
    %15 = vector.broadcast %cst_10 : f32 to vector<32x8xf32>
    %16 = arith.maximumf %14, %15 : vector<32x8xf32>
    %cst_11 = arith.constant dense<0.000000e+00> : vector<1x8xf32>
    %17 = tpu.matmul %4, %16, %cst_11 {dimension_numbers = #tpu.dot_dimension_numbers<[1], [0], [0], [1], [0, 0, 1, 1], [], []>} : vector<1x32xf32>, vector<32x8xf32>, vector<1x8xf32> -> vector<1x8xf32>
    %18 = vector.broadcast %5 : vector<1x1xf32> to vector<1x8xf32>
    %19 = arith.addf %17, %18 : vector<1x8xf32>
    %cst_12 = arith.constant 0.000000e+00 : f32
    %20 = vector.broadcast %cst_12 : f32 to vector<1x8xf32>
    %21 = arith.subf %20, %19 : vector<1x8xf32>
    %cst_13 = arith.constant 8.000000e+01 : f32
    %22 = vector.broadcast %cst_13 : f32 to vector<1x8xf32>
    %23 = arith.minimumf %21, %22 : vector<1x8xf32>
    %24 = math.exp %23 : vector<1x8xf32>
    %cst_14 = arith.constant 1.000000e+00 : f32
    %25 = vector.broadcast %cst_14 : f32 to vector<1x8xf32>
    %26 = arith.addf %25, %24 : vector<1x8xf32>
    %27 = tpu.reciprocal %26 {approx = true} : vector<1x8xf32> -> vector<1x8xf32>
    %28 = arith.mulf %26, %27 : vector<1x8xf32>
    %cst_15 = arith.constant 2.000000e+00 : f32
    %29 = vector.broadcast %cst_15 : f32 to vector<1x8xf32>
    %30 = arith.subf %29, %28 : vector<1x8xf32>
    %31 = arith.mulf %27, %30 : vector<1x8xf32>
    %c0_16 = arith.constant 0 : index
    %c0_17 = arith.constant 0 : index
    %32 = vector.load %arg3[%c0_16, %c0_17] : memref<1x8xf32, #tpu.memory_space<vmem>>, vector<1x8xf32>
    tpu.vector_store %arg3[%c0_16, %c0_17], %31 {strides = array<i32>} : memref<1x8xf32, #tpu.memory_space<vmem>>, vector<1x8xf32>,
    return
  }
  func.func @transform_0(%arg0: i32) -> (i32, i32) {
    %c0_i32 = arith.constant 0 : i32
    %c0_i32_0 = arith.constant 0 : i32
    return %c0_i32, %arg0 : i32, i32
  }
  func.func @transform_1(%arg0: i32) -> (i32, i32) {
    %c0_i32 = arith.constant 0 : i32
    %c0_i32_0 = arith.constant 0 : i32
    %c0_i32_1 = arith.constant 0 : i32
    return %c0_i32, %c0_i32_0 : i32, i32
  }
  func.func @transform_2(%arg0: i32) -> (i32, i32) {
    %c0_i32 = arith.constant 0 : i32
    %c0_i32_0 = arith.constant 0 : i32
    return %c0_i32, %arg0 : i32, i32
  }
}

</mosaic_0001>

<llo_original>
// kernel: tpu_custom_call.1
$region0: #{tpu_custom_call.1}
  #allocation0 [shape = 'u32[]', space=smem, size = 0x4, offset = 0x4, fixed_abs, tag = 'smem constant byte address 0x4 - core index']
  #allocation1 [shape = 'u32[72,128]{1,0:T(1,128)}', space=vmem, size = 0x9000, scoped, tag = 'internal scratch']
  %s0 = inlined_call_operand.vmem [shape: f32[8,8], index: 0, kind: input, shape index: {}]
  %s1 = inlined_call_operand.vmem [shape: f32[144,32], index: 1, kind: input, shape index: {}]
  %s2 = inlined_call_operand.hbm [shape: f32[1,8], index: 2, kind: output, shape index: {}]
  %s3 = sld [smem:[#allocation0]]
  $region18: #{tpu_custom_call.1} parent=0
    _
  %s5 = ssub.s32 1, %s3
  %s6 = scalar_select 0, %s5, %s3
  $region1: #{tpu_custom_call.1} parent=0
    #allocation2 [shape = 'u8[512]{0}', space=vmem, size = 0x400, scoped, tag = 'output window, operand 0, single buffered']
    #allocation3 [shape = 's32[1]{0}', space=sflag, size = 0x4, scoped, tag = 'scoped memory for tpu_custom_call.1']
    %7 = vsyncpa [#allocation3], 0
    // Predicated region
    $region2: #{tpu_custom_call.1} parent=1 // pred_check
      _
    $region3: #{tpu_custom_call.1} parent=1 // pred_check_branch
      %9 = sbr.rel (0) target = $region5
    $region4: #{tpu_custom_call.1} parent=1 // pred_region
      _
    $region5: #{tpu_custom_call.1} parent=1 // pred_fallthru
      _
    // Predicated region
    $region6: #{tpu_custom_call.1} parent=1 // pred_check
      _
    $region7: #{tpu_custom_call.1} parent=1 // pred_check_branch
      %11 = sbr.rel (0) target = $region9
    $region8: #{tpu_custom_call.1} parent=1 // pred_region
      _
    $region9: #{tpu_custom_call.1} parent=1 // pred_fallthru
      _
    %v12 = vld [vmem:[%s1] sm:$0xff]
    %v13 = vld [vmem:[%s1 + $0x8] sm:$0xff]
    %v14 = vld [vmem:[%s1 + $0x10] sm:$0xff]
    %v15 = vld [vmem:[%s1 + $0x18] sm:$0xff]
    %v16 = vld [vmem:[%s1 + $0x20] sm:$0xff]
    %v17 = vld [vmem:[%s1 + $0x28] sm:$0xff]
    %v18 = vld [vmem:[%s1 + $0x30] sm:$0xff]
    %v19 = vld [vmem:[%s1 + $0x38] sm:$0xff]
    %v20 = vld [vmem:[%s1 + $0x40] sm:$0xff]
    %v21 = vld [vmem:[%s1 + $0x48] sm:$0xff]
    %v22 = vld [vmem:[%s1 + $0x50] sm:$0xff]
    %v23 = vld [vmem:[%s1 + $0x58] sm:$0xff]
    %v24 = vld [vmem:[%s1 + $0x60] sm:$0xff]
    %v25 = vld [vmem:[%s1 + $0x68] sm:$0xff]
    %v26 = vld [vmem:[%s1 + $0x70] sm:$0xff]
    %v27 = vld [vmem:[%s1 + $0x78] sm:$0xff]
    %v28 = vld [vmem:[%s1 + $0x80] sm:$0x1]
    %v29 = vld [vmem:[%s1 + $0x88] sm:$0x1]
    %v30 = vld [vmem:[%s0] sm:$0xff]
    %32 = vset.pattern.permute.xlu0 0
    %33 = vperm.xlu0 %32, %v20
    %v34 = vpop.permute.xlu0 %33
    %37 = vset.pattern.permute.xlu0 0
    %38 = vperm.xlu0 %37, %v21
    %v39 = vpop.permute.xlu0 %38
    %42 = vset.pattern.permute.xlu0 0
    %43 = vperm.xlu0 %42, %v22
    %v44 = vpop.permute.xlu0 %43
    %47 = vset.pattern.permute.xlu0 0
    %48 = vperm.xlu0 %47, %v23
    %v49 = vpop.permute.xlu0 %48
    %vm51 = vcmask 64512
    %v53 = vsel %vm51, %v16, 0
    %v56 = vsel %vm51, %v17, 0
    %v59 = vsel %vm51, %v18, 0
    %v62 = vsel %vm51, %v19, 0
    %64 = vmatpush.msra.mxu0 0.0
    %65 = vmatpush.msra.mxu0 0.0
    %66 = vmatpush.msra.mxu0 0.0
    %67 = vmatpush.msra.mxu0 0.0
    %68 = vmatpush.msra.mxu0 0.0
    %69 = vmatpush.msra.mxu0 0.0
    %70 = vmatpush.msra.mxu0 0.0
    %71 = vmatpush.msra.mxu0 0.0
    %72 = vmatpush.msra.mxu0 0.0
    %73 = vmatpush.msra.mxu0 0.0
    %74 = vmatpush.msra.mxu0 0.0
    %75 = vmatpush.msra.mxu0 0.0
    %76 = vmatpush.msra.mxu0 0.0
    %77 = vmatpush.msra.mxu0 0.0
    %78 = vmatpush.msra.mxu0 0.0
    %79 = vmatpush.msra.mxu0 %v30
    %80 = vmatmul.f32.gmra.mxu0 %v53
    %v81 = vpop.f32.mrf.mxu0
    %v82 = vadd.f32 %v34, %v81
    %83 = vmatmul.f32.gmra.mxu0 %v56
    %v84 = vpop.f32.mrf.mxu0
    %v85 = vadd.f32 %v39, %v84
    %86 = vmatmul.f32.gmra.mxu0 %v59
    %v87 = vpop.f32.mrf.mxu0
    %v88 = vadd.f32 %v44, %v87
    %89 = vmatmul.f32.gmra.mxu0 %v62
    %v90 = vpop.f32.mrf.mxu0
    %v91 = vadd.f32 %v49, %v90
    %92 = vdwg.mxu0
    %v93 = vmax.f32 %v82, 0.0
    %v94 = vmax.f32 %v85, 0.0
    %v95 = vmax.f32 %v88, 0.0
    %v96 = vmax.f32 %v91, 0.0
    %98 = vset.pattern.permute.xlu0 0
    %99 = vperm.xlu0 %98, %v24
    %v100 = vpop.permute.xlu0 %99
    %103 = vset.pattern.permute.xlu0 0
    %104 = vperm.xlu0 %103, %v25
    %v105 = vpop.permute.xlu0 %104
    %108 = vset.pattern.permute.xlu0 0
    %109 = vperm.xlu0 %108, %v26
    %v110 = vpop.permute.xlu0 %109
    %113 = vset.pattern.permute.xlu0 0
    %114 = vperm.xlu0 %113, %v27
    %v115 = vpop.permute.xlu0 %114
    %vm117 = vcmask 261120
    %v119 = vsel %vm117, %v12, 0
    %v122 = vsel %vm117, %v13, 0
    %v125 = vsel %vm117, %v14, 0
    %v128 = vsel %vm117, %v15, 0
    %130 = vmatpush.msra.mxu0 0.0
    %131 = vmatpush.msra.mxu0 0.0
    %132 = vmatpush.msra.mxu0 0.0
    %133 = vmatpush.msra.mxu0 0.0
    %134 = vmatpush.msra.mxu0 0.0
    %135 = vmatpush.msra.mxu0 0.0
    %136 = vmatpush.msra.mxu0 0.0
    %137 = vmatpush.msra.mxu0 0.0
    %138 = vmatpush.msra.mxu0 0.0
    %139 = vmatpush.msra.mxu0 0.0
    %140 = vmatpush.msra.mxu0 0.0
    %141 = vmatpush.msra.mxu0 0.0
    %142 = vmatpush.msra.mxu0 %v96
    %143 = vmatpush.msra.mxu0 %v95
    %144 = vmatpush.msra.mxu0 %v94
    %145 = vmatpush.msra.mxu0 %v93
    %146 = vmatmul.f32.gmra.mxu0 %v119
    %v147 = vpop.f32.mrf.mxu0
    %v148 = vadd.f32 %v100, %v147
    %149 = vmatmul.f32.gmra.mxu0 %v122
    %v150 = vpop.f32.mrf.mxu0
    %v151 = vadd.f32 %v105, %v150
    %152 = vmatmul.f32.gmra.mxu0 %v125
    %v153 = vpop.f32.mrf.mxu0
    %v154 = vadd.f32 %v110, %v153
    %155 = vmatmul.f32.gmra.mxu0 %v128
    %v156 = vpop.f32.mrf.mxu0
    %v157 = vadd.f32 %v115, %v156
    %158 = vdwg.mxu0
    %v159 = vmax.f32 %v148, 0.0
    %v160 = vmax.f32 %v151, 0.0
    %v161 = vmax.f32 %v154, 0.0
    %v162 = vmax.f32 %v157, 0.0
    %164 = vset.pattern.permute.xlu0 0
    %165 = vperm.xlu0 %164, %v29
    %v166 = vpop.permute.xlu0 %165
    %v169 = vsel %vm117, %v28, 0
    %171 = vmatpush.msra.mxu0 0.0
    %172 = vmatpush.msra.mxu0 0.0
    %173 = vmatpush.msra.mxu0 0.0
    %174 = vmatpush.msra.mxu0 0.0
    %175 = vmatpush.msra.mxu0 0.0
    %176 = vmatpush.msra.mxu0 0.0
    %177 = vmatpush.msra.mxu0 0.0
    %178 = vmatpush.msra.mxu0 0.0
    %179 = vmatpush.msra.mxu0 0.0
    %180 = vmatpush.msra.mxu0 0.0
    %181 = vmatpush.msra.mxu0 0.0
    %182 = vmatpush.msra.mxu0 0.0
    %183 = vmatpush.msra.mxu0 %v162
    %184 = vmatpush.msra.mxu0 %v161
    %185 = vmatpush.msra.mxu0 %v160
    %186 = vmatpush.msra.mxu0 %v159
    %187 = vmatmul.f32.gmra.mxu0 %v169
    %v188 = vpop.f32.mrf.mxu0
    %v189 = vadd.f32 %v166, %v188
    %190 = vdwg.mxu0
    %v191 = vsub.f32 0.0, %v189
    %v192 = vmin.f32 %v191, 80.0
    %v193 = vmul.f32 %v192, 1.442695
    %v194 = vpow.pop %v193
    %v195 = vadd.f32 %v194, 1.0
    %v196 = vrcp.pop %v195
    %v197 = vmul.f32 %v195, %v196
    %v198 = vsub.f32 2.0, %v197
    %v199 = vmul.f32 %v196, %v198
    %vm200 = vcmask 57344
    %201 = vst.msk [vmem:[#allocation2] sm:$0x1] %vm200, %v199
    // Predicated region
    $region10: #{tpu_custom_call.1} parent=1 // pred_check
      _
    $region11: #{tpu_custom_call.1} parent=1 // pred_check_branch
      %203 = sbr.rel (0) target = $region13
    $region12: #{tpu_custom_call.1} parent=1 // pred_region
      %205 = vsyncadd [#allocation3], 0
      %s207 = sshll.u32 [#allocation2], 4
      %s208 = int_to_ptr.vmem [resolvable:$true] %s207
      %s209 = sshll.u32 %s2, 4
      %s210 = int_to_ptr.hbm [resolvable:$true] %s209
      %212 = dma.vmem_to_hbm [thread:$0]  %s208, 16, %s210, [#allocation3]
    $region13: #{tpu_custom_call.1} parent=1 // pred_fallthru
      _
    // Predicated region
    $region14: #{tpu_custom_call.1} parent=1 // pred_check
      _
    $region15: #{tpu_custom_call.1} parent=1 // pred_check_branch
      %214 = sbr.rel (0) target = $region17
    $region16: #{tpu_custom_call.1} parent=1 // pred_region
      %216 = dma.done [#allocation3], 16
    $region17: #{tpu_custom_call.1} parent=1 // pred_fallthru
      _
    %217 = vsyncpa [#allocation3], 1

</llo_original>
